<compile_context>
chip_gen: v7x
topology: tpu7x:2x2x1
jax: 0.10.0
libtpu: 0.0.40
codegen_flags: <defaults>
</compile_context>

<pallas_src>
import math

import jax
import jax.numpy as jnp
from jax.experimental import pallas as pl
from jax.experimental.pallas import tpu as pltpu


def _round_up(x, m):
    return ((x + m - 1) // m) * m


def _class_classifier_kernel(x_ref, w_ref, b_ref, o_ref):
    # x_ref: (TB, Fp)   w_ref: (Fp, Cp)   b_ref: (1, Cp)   o_ref: (TB, Cp)
    x = x_ref[...]  # float32

    # TODO(synk): Dropout(p=0.1) is identity in eval mode; training-mode dropout
    # with torch-matching RNG has no clean equivalent here.

    # Exact (erf-based) GELU in f32, matching nn.GELU() default.
    inv_sqrt2 = 0.7071067811865476
    g = 0.5 * x * (1.0 + jax.lax.erf(x * inv_sqrt2))

    # TODO(synk): on v6e/v7x, feeding bf16 operands here would halve HBM traffic
    # (kept f32 to match the 1e-4 validation tolerance).
    y = jnp.dot(g, w_ref[...], preferred_element_type=jnp.float32)
    o_ref[...] = (y + b_ref[...]).astype(o_ref.dtype)


def class_classifier(x, w_t, b, *, tb_target=512):
    """x: (B, F) float32; w_t: (F, C); b: (C,). Returns (B, C) float32."""
    B, F = x.shape
    F2, C = w_t.shape
    assert F == F2

    # Lane/sublane-friendly padded shapes.
    Fp = _round_up(F, 128)    # 1000 -> 1024
    Cp = _round_up(C, 128)    # 15   -> 128 (lane-dense output)

    # Batch tiling: pick the largest tile up to tb_target that divides padded B.
    Bp = _round_up(max(B, 8), 8)
    if Bp > tb_target:
        TB = tb_target
        Bp = _round_up(Bp, TB)
    else:
        TB = Bp
    grid = (Bp // TB,)

    # Zero-padded operands (padded weight cols / bias entries are zero, padded
    # x rows/cols are zero, so padded output columns are just bias=0 / rows are
    # discarded by the slice below).
    x_p = jnp.zeros((Bp, Fp), jnp.float32).at[:B, :F].set(x)
    w_p = jnp.zeros((Fp, Cp), jnp.float32).at[:F, :C].set(w_t)
    b_p = jnp.zeros((1, Cp), jnp.float32).at[0, :C].set(b)

    out_p = pl.pallas_call(
        _class_classifier_kernel,
        out_shape=jax.ShapeDtypeStruct((Bp, Cp), jnp.float32),
        grid=grid,
        in_specs=[
            pl.BlockSpec((TB, Fp), lambda i: (i, 0)),   # streamed batch tiles
            pl.BlockSpec((Fp, Cp), lambda i: (0, 0)),   # VMEM-resident weight
            pl.BlockSpec((1, Cp), lambda i: (0, 0)),    # VMEM-resident bias
        ],
        out_specs=pl.BlockSpec((TB, Cp), lambda i: (i, 0)),
        compiler_params=pltpu.CompilerParams(
            dimension_semantics=("parallel",),
            vmem_limit_bytes=64 * 1024 * 1024,
        ),
    )(x_p, w_p, b_p)

    return out_p[:B, :C]


def _reference(x, w_t, b):
    g = 0.5 * x * (1.0 + jax.lax.erf(x / math.sqrt(2.0)))
    return g @ w_t + b


if __name__ == "__main__":
    num_features = 1000
    num_classes = 15
    batch = 8

    key = jax.random.PRNGKey(0)
    kx, kw, kb = jax.random.split(key, 3)

    # Deterministic parameter init (shapes from nn.Linear(num_features, num_classes)).
    bound = 1.0 / math.sqrt(num_features)
    w = jax.random.uniform(kw, (num_classes, num_features), jnp.float32,
                           minval=-bound, maxval=bound)       # torch layout [C, F]
    b = jax.random.uniform(kb, (num_classes,), jnp.float32,
                           minval=-bound, maxval=bound)
    w_t = w.T  # [F, C] for the kernel

    x = jax.random.normal(kx, (batch, num_features), jnp.float32)

    out = class_classifier(x, w_t, b)
    out = jax.block_until_ready(out)

    ref = _reference(x, w_t, b)
    assert out.shape == (batch, num_classes)
    assert jnp.allclose(out, ref, atol=1e-4, rtol=1e-4), "mismatch vs reference"

    print("KERNEL_OK")
</pallas_src>

<mosaic_0001>
module attributes {stable_mosaic.version = 11 : i64} {
  func.func @_class_classifier_kernel(%arg0: i32, %arg1: memref<8x1024xf32, #tpu.memory_space<vmem>>, %arg2: memref<1024x128xf32, #tpu.memory_space<vmem>>, %arg3: memref<1x128xf32, #tpu.memory_space<vmem>>, %arg4: memref<8x128xf32, #tpu.memory_space<vmem>>) attributes {dimension_semantics = [#tpu.dimension_semantics<parallel>], iteration_bounds = array<i64: 1>, scalar_prefetch = 0 : i64, scratch_operands = 0 : i64, tpu.core_type = #tpu.core_type<tc>, window_params = [{transform_indices = @transform_0, window_bounds = array<i64: 8, 1024>}, {pipeline_mode = #tpu.pipeline_mode<synchronous>, transform_indices = @transform_1, window_bounds = array<i64: 1024, 128>}, {pipeline_mode = #tpu.pipeline_mode<synchronous>, transform_indices = @transform_2, window_bounds = array<i64: 1, 128>}, {transform_indices = @transform_3, window_bounds = array<i64: 8, 128>}]} {
    %c0 = arith.constant 0 : index
    %c0_0 = arith.constant 0 : index
    %0 = vector.load %arg1[%c0, %c0_0] : memref<8x1024xf32, #tpu.memory_space<vmem>>, vector<8x1024xf32>
    %cst = arith.constant 5.000000e-01 : f32
    %1 = vector.broadcast %cst : f32 to vector<8x1024xf32>
    %2 = arith.mulf %1, %0 : vector<8x1024xf32>
    %cst_1 = arith.constant 0.707106769 : f32
    %3 = vector.broadcast %cst_1 : f32 to vector<8x1024xf32>
    %4 = arith.mulf %0, %3 : vector<8x1024xf32>
    %5 = math.erf %4 : vector<8x1024xf32>
    %cst_2 = arith.constant 1.000000e+00 : f32
    %6 = vector.broadcast %cst_2 : f32 to vector<8x1024xf32>
    %7 = arith.addf %6, %5 : vector<8x1024xf32>
    %8 = arith.mulf %2, %7 : vector<8x1024xf32>
    %c0_3 = arith.constant 0 : index
    %c0_4 = arith.constant 0 : index
    %9 = vector.load %arg2[%c0_3, %c0_4] : memref<1024x128xf32, #tpu.memory_space<vmem>>, vector<1024x128xf32>
    %cst_5 = arith.constant dense<0.000000e+00> : vector<8x128xf32>
    %10 = tpu.matmul %8, %9, %cst_5 {dimension_numbers = #tpu.dot_dimension_numbers<[1], [0], [0], [1], [0, 0, 1, 1], [], []>} : vector<8x1024xf32>, vector<1024x128xf32>, vector<8x128xf32> -> vector<8x128xf32>
    %c0_6 = arith.constant 0 : index
    %c0_7 = arith.constant 0 : index
    %11 = vector.load %arg3[%c0_6, %c0_7] : memref<1x128xf32, #tpu.memory_space<vmem>>, vector<1x128xf32>
    %12 = vector.broadcast %11 : vector<1x128xf32> to vector<8x128xf32>
    %13 = arith.addf %10, %12 : vector<8x128xf32>
    %c0_8 = arith.constant 0 : index
    %c0_9 = arith.constant 0 : index
    %14 = vector.load %arg4[%c0_8, %c0_9] : memref<8x128xf32, #tpu.memory_space<vmem>>, vector<8x128xf32>
    tpu.vector_store %arg4[%c0_8, %c0_9], %13 {strides = array<i32>} : memref<8x128xf32, #tpu.memory_space<vmem>>, vector<8x128xf32>,
    return
  }
  func.func @transform_0(%arg0: i32) -> (i32, i32) {
    %c0_i32 = arith.constant 0 : i32
    %c0_i32_0 = arith.constant 0 : i32
    return %arg0, %c0_i32 : i32, i32
  }
  func.func @transform_1(%arg0: i32) -> (i32, i32) {
    %c0_i32 = arith.constant 0 : i32
    %c0_i32_0 = arith.constant 0 : i32
    %c0_i32_1 = arith.constant 0 : i32
    return %c0_i32, %c0_i32_0 : i32, i32
  }
  func.func @transform_2(%arg0: i32) -> (i32, i32) {
    %c0_i32 = arith.constant 0 : i32
    %c0_i32_0 = arith.constant 0 : i32
    %c0_i32_1 = arith.constant 0 : i32
    return %c0_i32, %c0_i32_0 : i32, i32
  }
  func.func @transform_3(%arg0: i32) -> (i32, i32) {
    %c0_i32 = arith.constant 0 : i32
    %c0_i32_0 = arith.constant 0 : i32
    return %arg0, %c0_i32 : i32, i32
  }
}

</mosaic_0001>

<llo_original>
// kernel: tpu_custom_call.1
$region0: #{tpu_custom_call.1}
  #allocation0 [shape = 'u32[]', space=smem, size = 0x4, offset = 0x4, fixed_abs, tag = 'smem constant byte address 0x4 - core index']
  #allocation1 [shape = 'u32[144,128]{1,0:T(1,128)}', space=vmem, size = 0x12000, scoped, tag = 'internal scratch']
  %s0 = inlined_call_operand.hbm [shape: f32[8,1024], index: 0, kind: input, shape index: {}]
  %s1 = inlined_call_operand.hbm [shape: f32[1024,128], index: 1, kind: input, shape index: {}]
  %s2 = inlined_call_operand.hbm [shape: f32[1,128], index: 2, kind: input, shape index: {}]
  %s3 = inlined_call_operand.hbm [shape: f32[8,128], index: 3, kind: output, shape index: {}]
  %s4 = sld [smem:[#allocation0]]
  $region34: #{tpu_custom_call.1} parent=0
    _
  %s6 = ssub.s32 1, %s4
  %s7 = scalar_select 0, %s6, %s4
  $region1: #{tpu_custom_call.1} parent=0
    #allocation2 [shape = 'u8[32768]{0}', space=vmem, size = 0x8000, scoped, tag = 'input window, operand 0, single buffered']
    #allocation3 [shape = 's32[1]{0}', space=sflag, size = 0x4, scoped, tag = 'scoped memory for tpu_custom_call.1']
    #allocation4 [shape = 's32[1]{0}', space=sflag, size = 0x4, scoped, tag = 'scoped memory for tpu_custom_call.1']
    #allocation5 [shape = 'u8[524288]{0}', space=vmem, size = 0x80000, scoped, tag = 'input window, operand 1, single buffered']
    #allocation6 [shape = 's32[1]{0}', space=sflag, size = 0x4, scoped, tag = 'scoped memory for tpu_custom_call.1']
    #allocation7 [shape = 'u8[512]{0}', space=vmem, size = 0x400, scoped, tag = 'input window, operand 2, single buffered']
    #allocation8 [shape = 'u8[4096]{0}', space=vmem, size = 0x1000, scoped, tag = 'output window, operand 0, single buffered']
    %8 = vsyncpa [#allocation3], 0
    %9 = vsyncpa [#allocation6], 0
    %10 = vsyncpa [#allocation4], 0
    // Predicated region
    $region2: #{tpu_custom_call.1} parent=1 // pred_check
      _
    $region3: #{tpu_custom_call.1} parent=1 // pred_check_branch
      %12 = sbr.rel (0) target = $region5
    $region4: #{tpu_custom_call.1} parent=1 // pred_region
      %s14 = ssub.s32 1024, 1024
      %15 = vsyncadd [#allocation3], %s14
      %s17 = sshll.u32 [#allocation2], 4
      %s18 = int_to_ptr.vmem [resolvable:$true] %s17
      %20 = dma.hbm_to_vmem [thread:$0]  %s0, 1024, %s18, [#allocation3]
    $region5: #{tpu_custom_call.1} parent=1 // pred_fallthru
      _
    // Predicated region
    $region6: #{tpu_custom_call.1} parent=1 // pred_check
      _
    $region7: #{tpu_custom_call.1} parent=1 // pred_check_branch
      %22 = sbr.rel (0) target = $region9
    $region8: #{tpu_custom_call.1} parent=1 // pred_region
      %s24 = ssub.s32 16384, 16384
      %25 = vsyncadd [#allocation6], %s24
      %s26 = sshll.u32 [#allocation5], 4
      %s27 = int_to_ptr.vmem [resolvable:$true] %s26
      %32 = dma.hbm_to_vmem [thread:$0]  %s1, 16384, %s27, [#allocation6], 128, 128, 8
    $region9: #{tpu_custom_call.1} parent=1 // pred_fallthru
      _
    // Predicated region
    $region10: #{tpu_custom_call.1} parent=1 // pred_check
      _
    $region11: #{tpu_custom_call.1} parent=1 // pred_check_branch
      %34 = sbr.rel (0) target = $region13
    $region12: #{tpu_custom_call.1} parent=1 // pred_region
      %s36 = ssub.s32 16, 16
      %37 = vsyncadd [#allocation6], %s36
      %s39 = sshll.u32 [#allocation7], 4
      %s40 = int_to_ptr.vmem [resolvable:$true] %s39
      %42 = dma.hbm_to_vmem [thread:$0]  %s2, 16, %s40, [#allocation6]
    $region13: #{tpu_custom_call.1} parent=1 // pred_fallthru
      _
    // Predicated region
    $region14: #{tpu_custom_call.1} parent=1 // pred_check
      _
    $region15: #{tpu_custom_call.1} parent=1 // pred_check_branch
      %44 = sbr.rel (0) target = $region17
    $region16: #{tpu_custom_call.1} parent=1 // pred_region
      %45 = dma.done [#allocation3], 1024
    $region17: #{tpu_custom_call.1} parent=1 // pred_fallthru
      _
    // Predicated region
    $region18: #{tpu_custom_call.1} parent=1 // pred_check
      _
    $region19: #{tpu_custom_call.1} parent=1 // pred_check_branch
      %47 = sbr.rel (0) target = $region21
    $region20: #{tpu_custom_call.1} parent=1 // pred_region
      %48 = dma.done [#allocation6], 16384
    $region21: #{tpu_custom_call.1} parent=1 // pred_fallthru
      _
    // Predicated region
    $region22: #{tpu_custom_call.1} parent=1 // pred_check
      _
    $region23: #{tpu_custom_call.1} parent=1 // pred_check_branch
      %50 = sbr.rel (0) target = $region25
    $region24: #{tpu_custom_call.1} parent=1 // pred_region
      %51 = dma.done [#allocation6], 16
    $region25: #{tpu_custom_call.1} parent=1 // pred_fallthru
      _
    %v52 = vld [vmem:[#allocation2] sm:$0xff]
    %v53 = vld [vmem:[#allocation2 + $0x8] sm:$0xff]
    %v54 = vld [vmem:[#allocation2 + $0x10] sm:$0xff]
    %v55 = vld [vmem:[#allocation2 + $0x18] sm:$0xff]
    %v56 = vld [vmem:[#allocation2 + $0x20] sm:$0xff]
    %v57 = vld [vmem:[#allocation2 + $0x28] sm:$0xff]
    %v58 = vld [vmem:[#allocation2 + $0x30] sm:$0xff]
    %v59 = vld [vmem:[#allocation2 + $0x38] sm:$0xff]
    %v60 = vmul.f32 %v52, 0.5
    %v61 = vmul.f32 %v53, 0.5
    %v62 = vmul.f32 %v54, 0.5
    %v63 = vmul.f32 %v55, 0.5
    %v64 = vmul.f32 %v56, 0.5
    %v65 = vmul.f32 %v57, 0.5
    %v66 = vmul.f32 %v58, 0.5
    %v67 = vmul.f32 %v59, 0.5
    %v68 = vmul.f32 %v52, 0.70710677
    %v69 = vmul.f32 %v53, 0.70710677
    %v70 = vmul.f32 %v54, 0.70710677
    %v71 = vmul.f32 %v55, 0.70710677
    %v72 = vmul.f32 %v56, 0.70710677
    %v73 = vmul.f32 %v57, 0.70710677
    %v74 = vmul.f32 %v58, 0.70710677
    %v75 = vmul.f32 %v59, 0.70710677
    %v76 = verf.f32.pop %v68
    %v77 = verf.f32.pop %v69
    %v78 = verf.f32.pop %v70
    %v79 = verf.f32.pop %v71
    %v80 = verf.f32.pop %v72
    %v81 = verf.f32.pop %v73
    %v82 = verf.f32.pop %v74
    %v83 = verf.f32.pop %v75
    %v84 = vadd.f32 %v76, 1.0
    %v85 = vadd.f32 %v77, 1.0
    %v86 = vadd.f32 %v78, 1.0
    %v87 = vadd.f32 %v79, 1.0
    %v88 = vadd.f32 %v80, 1.0
    %v89 = vadd.f32 %v81, 1.0
    %v90 = vadd.f32 %v82, 1.0
    %v91 = vadd.f32 %v83, 1.0
    %v92 = vmul.f32 %v60, %v84
    %v93 = vmul.f32 %v61, %v85
    %v94 = vmul.f32 %v62, %v86
    %v95 = vmul.f32 %v63, %v87
    %v96 = vmul.f32 %v64, %v88
    %v97 = vmul.f32 %v65, %v89
    %v98 = vmul.f32 %v66, %v90
    %v99 = vmul.f32 %v67, %v91
    %v100 = vld [vmem:[#allocation5] sm:$0xff]
    %v101 = vld [vmem:[#allocation5 + $0x8] sm:$0xff]
    %v102 = vld [vmem:[#allocation5 + $0x10] sm:$0xff]
    %v103 = vld [vmem:[#allocation5 + $0x18] sm:$0xff]
    %v104 = vld [vmem:[#allocation5 + $0x20] sm:$0xff]
    %v105 = vld [vmem:[#allocation5 + $0x28] sm:$0xff]
    %v106 = vld [vmem:[#allocation5 + $0x30] sm:$0xff]
    %v107 = vld [vmem:[#allocation5 + $0x38] sm:$0xff]
    %v108 = vld [vmem:[#allocation5 + $0x40] sm:$0xff]
    %v109 = vld [vmem:[#allocation5 + $0x48] sm:$0xff]
    %v110 = vld [vmem:[#allocation5 + $0x50] sm:$0xff]
    %v111 = vld [vmem:[#allocation5 + $0x58] sm:$0xff]
    %v112 = vld [vmem:[#allocation5 + $0x60] sm:$0xff]
    %v113 = vld [vmem:[#allocation5 + $0x68] sm:$0xff]
    %v114 = vld [vmem:[#allocation5 + $0x70] sm:$0xff]
    %v115 = vld [vmem:[#allocation5 + $0x78] sm:$0xff]
    %v116 = vld [vmem:[#allocation5 + $0x80] sm:$0xff]
    %v117 = vld [vmem:[#allocation5 + $0x88] sm:$0xff]
    %v118 = vld [vmem:[#allocation5 + $0x90] sm:$0xff]
    %v119 = vld [vmem:[#allocation5 + $0x98] sm:$0xff]
    %v120 = vld [vmem:[#allocation5 + $0xa0] sm:$0xff]
    %v121 = vld [vmem:[#allocation5 + $0xa8] sm:$0xff]
    %v122 = vld [vmem:[#allocation5 + $0xb0] sm:$0xff]
    %v123 = vld [vmem:[#allocation5 + $0xb8] sm:$0xff]
    %v124 = vld [vmem:[#allocation5 + $0xc0] sm:$0xff]
    %v125 = vld [vmem:[#allocation5 + $0xc8] sm:$0xff]
    %v126 = vld [vmem:[#allocation5 + $0xd0] sm:$0xff]
    %v127 = vld [vmem:[#allocation5 + $0xd8] sm:$0xff]
    %v128 = vld [vmem:[#allocation5 + $0xe0] sm:$0xff]
    %v129 = vld [vmem:[#allocation5 + $0xe8] sm:$0xff]
    %v130 = vld [vmem:[#allocation5 + $0xf0] sm:$0xff]
    %v131 = vld [vmem:[#allocation5 + $0xf8] sm:$0xff]
    %v132 = vld [vmem:[#allocation5 + $0x100] sm:$0xff]
    %v133 = vld [vmem:[#allocation5 + $0x108] sm:$0xff]
    %v134 = vld [vmem:[#allocation5 + $0x110] sm:$0xff]
    %v135 = vld [vmem:[#allocation5 + $0x118] sm:$0xff]
    %v136 = vld [vmem:[#allocation5 + $0x120] sm:$0xff]
    %v137 = vld [vmem:[#allocation5 + $0x128] sm:$0xff]
    %v138 = vld [vmem:[#allocation5 + $0x130] sm:$0xff]
    %v139 = vld [vmem:[#allocation5 + $0x138] sm:$0xff]
    %v140 = vld [vmem:[#allocation5 + $0x140] sm:$0xff]
    %v141 = vld [vmem:[#allocation5 + $0x148] sm:$0xff]
    %v142 = vld [vmem:[#allocation5 + $0x150] sm:$0xff]
    %v143 = vld [vmem:[#allocation5 + $0x158] sm:$0xff]
    %v144 = vld [vmem:[#allocation5 + $0x160] sm:$0xff]
    %v145 = vld [vmem:[#allocation5 + $0x168] sm:$0xff]
    %v146 = vld [vmem:[#allocation5 + $0x170] sm:$0xff]
    %v147 = vld [vmem:[#allocation5 + $0x178] sm:$0xff]
    %v148 = vld [vmem:[#allocation5 + $0x180] sm:$0xff]
    %v149 = vld [vmem:[#allocation5 + $0x188] sm:$0xff]
    %v150 = vld [vmem:[#allocation5 + $0x190] sm:$0xff]
    %v151 = vld [vmem:[#allocation5 + $0x198] sm:$0xff]
    %v152 = vld [vmem:[#allocation5 + $0x1a0] sm:$0xff]
    %v153 = vld [vmem:[#allocation5 + $0x1a8] sm:$0xff]
    %v154 = vld [vmem:[#allocation5 + $0x1b0] sm:$0xff]
    %v155 = vld [vmem:[#allocation5 + $0x1b8] sm:$0xff]
    %v156 = vld [vmem:[#allocation5 + $0x1c0] sm:$0xff]
    %v157 = vld [vmem:[#allocation5 + $0x1c8] sm:$0xff]
    %v158 = vld [vmem:[#allocation5 + $0x1d0] sm:$0xff]
    %v159 = vld [vmem:[#allocation5 + $0x1d8] sm:$0xff]
    %v160 = vld [vmem:[#allocation5 + $0x1e0] sm:$0xff]
    %v161 = vld [vmem:[#allocation5 + $0x1e8] sm:$0xff]
    %v162 = vld [vmem:[#allocation5 + $0x1f0] sm:$0xff]
    %v163 = vld [vmem:[#allocation5 + $0x1f8] sm:$0xff]
    %v164 = vld [vmem:[#allocation5 + $0x200] sm:$0xff]
    %v165 = vld [vmem:[#allocation5 + $0x208] sm:$0xff]
    %v166 = vld [vmem:[#allocation5 + $0x210] sm:$0xff]
    %v167 = vld [vmem:[#allocation5 + $0x218] sm:$0xff]
    %v168 = vld [vmem:[#allocation5 + $0x220] sm:$0xff]
    %v169 = vld [vmem:[#allocation5 + $0x228] sm:$0xff]
    %v170 = vld [vmem:[#allocation5 + $0x230] sm:$0xff]
    %v171 = vld [vmem:[#allocation5 + $0x238] sm:$0xff]
    %v172 = vld [vmem:[#allocation5 + $0x240] sm:$0xff]
    %v173 = vld [vmem:[#allocation5 + $0x248] sm:$0xff]
    %v174 = vld [vmem:[#allocation5 + $0x250] sm:$0xff]
    %v175 = vld [vmem:[#allocation5 + $0x258] sm:$0xff]
    %v176 = vld [vmem:[#allocation5 + $0x260] sm:$0xff]
    %v177 = vld [vmem:[#allocation5 + $0x268] sm:$0xff]
    %v178 = vld [vmem:[#allocation5 + $0x270] sm:$0xff]
    %v179 = vld [vmem:[#allocation5 + $0x278] sm:$0xff]
    %v180 = vld [vmem:[#allocation5 + $0x280] sm:$0xff]
    %v181 = vld [vmem:[#allocation5 + $0x288] sm:$0xff]
    %v182 = vld [vmem:[#allocation5 + $0x290] sm:$0xff]
    %v183 = vld [vmem:[#allocation5 + $0x298] sm:$0xff]
    %v184 = vld [vmem:[#allocation5 + $0x2a0] sm:$0xff]
    %v185 = vld [vmem:[#allocation5 + $0x2a8] sm:$0xff]
    %v186 = vld [vmem:[#allocation5 + $0x2b0] sm:$0xff]
    %v187 = vld [vmem:[#allocation5 + $0x2b8] sm:$0xff]
    %v188 = vld [vmem:[#allocation5 + $0x2c0] sm:$0xff]
    %v189 = vld [vmem:[#allocation5 + $0x2c8] sm:$0xff]
    %v190 = vld [vmem:[#allocation5 + $0x2d0] sm:$0xff]
    %v191 = vld [vmem:[#allocation5 + $0x2d8] sm:$0xff]
    %v192 = vld [vmem:[#allocation5 + $0x2e0] sm:$0xff]
    %v193 = vld [vmem:[#allocation5 + $0x2e8] sm:$0xff]
    %v194 = vld [vmem:[#allocation5 + $0x2f0] sm:$0xff]
    %v195 = vld [vmem:[#allocation5 + $0x2f8] sm:$0xff]
    %v196 = vld [vmem:[#allocation5 + $0x300] sm:$0xff]
    %v197 = vld [vmem:[#allocation5 + $0x308] sm:$0xff]
    %v198 = vld [vmem:[#allocation5 + $0x310] sm:$0xff]
    %v199 = vld [vmem:[#allocation5 + $0x318] sm:$0xff]
    %v200 = vld [vmem:[#allocation5 + $0x320] sm:$0xff]
    %v201 = vld [vmem:[#allocation5 + $0x328] sm:$0xff]
    %v202 = vld [vmem:[#allocation5 + $0x330] sm:$0xff]
    %v203 = vld [vmem:[#allocation5 + $0x338] sm:$0xff]
    %v204 = vld [vmem:[#allocation5 + $0x340] sm:$0xff]
    %v205 = vld [vmem:[#allocation5 + $0x348] sm:$0xff]
    %v206 = vld [vmem:[#allocation5 + $0x350] sm:$0xff]
    %v207 = vld [vmem:[#allocation5 + $0x358] sm:$0xff]
    %v208 = vld [vmem:[#allocation5 + $0x360] sm:$0xff]
    %v209 = vld [vmem:[#allocation5 + $0x368] sm:$0xff]
    %v210 = vld [vmem:[#allocation5 + $0x370] sm:$0xff]
    %v211 = vld [vmem:[#allocation5 + $0x378] sm:$0xff]
    %v212 = vld [vmem:[#allocation5 + $0x380] sm:$0xff]
    %v213 = vld [vmem:[#allocation5 + $0x388] sm:$0xff]
    %v214 = vld [vmem:[#allocation5 + $0x390] sm:$0xff]
    %v215 = vld [vmem:[#allocation5 + $0x398] sm:$0xff]
    %v216 = vld [vmem:[#allocation5 + $0x3a0] sm:$0xff]
    %v217 = vld [vmem:[#allocation5 + $0x3a8] sm:$0xff]
    %v218 = vld [vmem:[#allocation5 + $0x3b0] sm:$0xff]
    %v219 = vld [vmem:[#allocation5 + $0x3b8] sm:$0xff]
    %v220 = vld [vmem:[#allocation5 + $0x3c0] sm:$0xff]
    %v221 = vld [vmem:[#allocation5 + $0x3c8] sm:$0xff]
    %v222 = vld [vmem:[#allocation5 + $0x3d0] sm:$0xff]
    %v223 = vld [vmem:[#allocation5 + $0x3d8] sm:$0xff]
    %v224 = vld [vmem:[#allocation5 + $0x3e0] sm:$0xff]
    %v225 = vld [vmem:[#allocation5 + $0x3e8] sm:$0xff]
    %v226 = vld [vmem:[#allocation5 + $0x3f0] sm:$0xff]
    %v227 = vld [vmem:[#allocation5 + $0x3f8] sm:$0xff]
    %v228 = vld [vmem:[#allocation7] sm:$0x1]
    %v230 = vlaneseq
    %v231 = vshrl.u32 %v230, 7
    %v232 = vsub.s32 0, %v231
    %v233 = vrot.slane %v228, %v232
    %235 = vmatprep.subr.mxu0 0.0
    %236 = vmatpush1.msra.mxu0 %v100
    %237 = vmatprep.subr.mxu0 0.0
    %238 = vmatpush1.msra.mxu0 %v101
    %239 = vmatprep.subr.mxu0 0.0
    %240 = vmatpush1.msra.mxu0 %v102
    %241 = vmatprep.subr.mxu0 0.0
    %242 = vmatpush1.msra.mxu0 %v103
    %243 = vmatprep.subr.mxu0 0.0
    %244 = vmatpush1.msra.mxu0 %v104
    %245 = vmatprep.subr.mxu0 0.0
    %246 = vmatpush1.msra.mxu0 %v105
    %247 = vmatprep.subr.mxu0 0.0
    %248 = vmatpush1.msra.mxu0 %v106
    %249 = vmatprep.subr.mxu0 0.0
    %250 = vmatpush1.msra.mxu0 %v107
    %251 = vmatprep.subr.mxu0 0.0
    %252 = vmatpush1.msra.mxu0 %v108
    %253 = vmatprep.subr.mxu0 0.0
    %254 = vmatpush1.msra.mxu0 %v109
    %255 = vmatprep.subr.mxu0 0.0
    %256 = vmatpush1.msra.mxu0 %v110
    %257 = vmatprep.subr.mxu0 0.0
    %258 = vmatpush1.msra.mxu0 %v111
    %259 = vmatprep.subr.mxu0 0.0
    %260 = vmatpush1.msra.mxu0 %v112
    %261 = vmatprep.subr.mxu0 0.0
    %262 = vmatpush1.msra.mxu0 %v113
    %263 = vmatprep.subr.mxu0 0.0
    %264 = vmatpush1.msra.mxu0 %v114
    %265 = vmatprep.subr.mxu0 0.0
    %266 = vmatpush1.msra.mxu0 %v115
    %267 = vmatprep.subr.mxu0 0.0
    %268 = vmatpush1.msra.mxu0 %v116
    %269 = vmatprep.subr.mxu0 0.0
    %270 = vmatpush1.msra.mxu0 %v117
    %271 = vmatprep.subr.mxu0 0.0
    %272 = vmatpush1.msra.mxu0 %v118
    %273 = vmatprep.subr.mxu0 0.0
    %274 = vmatpush1.msra.mxu0 %v119
    %275 = vmatprep.subr.mxu0 0.0
    %276 = vmatpush1.msra.mxu0 %v120
    %277 = vmatprep.subr.mxu0 0.0
    %278 = vmatpush1.msra.mxu0 %v121
    %279 = vmatprep.subr.mxu0 0.0
    %280 = vmatpush1.msra.mxu0 %v122
    %281 = vmatprep.subr.mxu0 0.0
    %282 = vmatpush1.msra.mxu0 %v123
    %283 = vmatprep.subr.mxu0 0.0
    %284 = vmatpush1.msra.mxu0 %v124
    %285 = vmatprep.subr.mxu0 0.0
    %286 = vmatpush1.msra.mxu0 %v125
    %287 = vmatprep.subr.mxu0 0.0
    %288 = vmatpush1.msra.mxu0 %v126
    %289 = vmatprep.subr.mxu0 0.0
    %290 = vmatpush1.msra.mxu0 %v127
    %291 = vmatprep.subr.mxu0 0.0
    %292 = vmatpush1.msra.mxu0 %v128
    %293 = vmatprep.subr.mxu0 0.0
    %294 = vmatpush1.msra.mxu0 %v129
    %295 = vmatprep.subr.mxu0 0.0
    %296 = vmatpush1.msra.mxu0 %v130
    %297 = vmatprep.subr.mxu0 0.0
    %298 = vmatpush1.msra.mxu0 %v131
    %299 = vmatprep.mubr.f32.mxu0 %v93
    %300 = vmatmul.mubr.f32.gmra.mrb[0].mxu0 %v92
    %v301 = vpop.f32.mrb[0].mxu0
    %v302 = vadd.f32 %v233, %v301
    %v303 = vpop.f32.mrb[0].mxu0
    %304 = vdwg.mxu0
    %305 = vmatprep.subr.mxu0 0.0
    %306 = vmatpush1.msra.mxu0 %v132
    %307 = vmatprep.subr.mxu0 0.0
    %308 = vmatpush1.msra.mxu0 %v133
    %309 = vmatprep.subr.mxu0 0.0
    %310 = vmatpush1.msra.mxu0 %v134
    %311 = vmatprep.subr.mxu0 0.0
    %312 = vmatpush1.msra.mxu0 %v135
    %313 = vmatprep.subr.mxu0 0.0
    %314 = vmatpush1.msra.mxu0 %v136
    %315 = vmatprep.subr.mxu0 0.0
    %316 = vmatpush1.msra.mxu0 %v137
    %317 = vmatprep.subr.mxu0 0.0
    %318 = vmatpush1.msra.mxu0 %v138
    %319 = vmatprep.subr.mxu0 0.0
    %320 = vmatpush1.msra.mxu0 %v139
    %321 = vmatprep.subr.mxu0 0.0
    %322 = vmatpush1.msra.mxu0 %v140
    %323 = vmatprep.subr.mxu0 0.0
    %324 = vmatpush1.msra.mxu0 %v141
    %325 = vmatprep.subr.mxu0 0.0
    %326 = vmatpush1.msra.mxu0 %v142
    %327 = vmatprep.subr.mxu0 0.0
    %328 = vmatpush1.msra.mxu0 %v143
    %329 = vmatprep.subr.mxu0 0.0
    %330 = vmatpush1.msra.mxu0 %v144
    %331 = vmatprep.subr.mxu0 0.0
    %332 = vmatpush1.msra.mxu0 %v145
    %333 = vmatprep.subr.mxu0 0.0
    %334 = vmatpush1.msra.mxu0 %v146
    %335 = vmatprep.subr.mxu0 0.0
    %336 = vmatpush1.msra.mxu0 %v147
    %337 = vmatprep.subr.mxu0 0.0
    %338 = vmatpush1.msra.mxu0 %v148
    %339 = vmatprep.subr.mxu0 0.0
    %340 = vmatpush1.msra.mxu0 %v149
    %341 = vmatprep.subr.mxu0 0.0
    %342 = vmatpush1.msra.mxu0 %v150
    %343 = vmatprep.subr.mxu0 0.0
    %344 = vmatpush1.msra.mxu0 %v151
    %345 = vmatprep.subr.mxu0 0.0
    %346 = vmatpush1.msra.mxu0 %v152
    %347 = vmatprep.subr.mxu0 0.0
    %348 = vmatpush1.msra.mxu0 %v153
    %349 = vmatprep.subr.mxu0 0.0
    %350 = vmatpush1.msra.mxu0 %v154
    %351 = vmatprep.subr.mxu0 0.0
    %352 = vmatpush1.msra.mxu0 %v155
    %353 = vmatprep.subr.mxu0 0.0
    %354 = vmatpush1.msra.mxu0 %v156
    %355 = vmatprep.subr.mxu0 0.0
    %356 = vmatpush1.msra.mxu0 %v157
    %357 = vmatprep.subr.mxu0 0.0
    %358 = vmatpush1.msra.mxu0 %v158
    %359 = vmatprep.subr.mxu0 0.0
    %360 = vmatpush1.msra.mxu0 %v159
    %361 = vmatprep.subr.mxu0 0.0
    %362 = vmatpush1.msra.mxu0 %v160
    %363 = vmatprep.subr.mxu0 0.0
    %364 = vmatpush1.msra.mxu0 %v161
    %365 = vmatprep.subr.mxu0 0.0
    %366 = vmatpush1.msra.mxu0 %v162
    %367 = vmatprep.subr.mxu0 0.0
    %368 = vmatpush1.msra.mxu0 %v163
    %369 = vmatprep.mubr.f32.mxu0 %v95
    %370 = vmatmul.mubr.f32.gmra.mrb[0].mxu0 %v94
    %v371 = vpop.f32.mrb[0].mxu0
    %v372 = vadd.f32 %v302, %v371
    %v373 = vpop.f32.mrb[0].mxu0
    %374 = vdwg.mxu0
    %375 = vmatprep.subr.mxu0 0.0
    %376 = vmatpush1.msra.mxu0 %v164
    %377 = vmatprep.subr.mxu0 0.0
    %378 = vmatpush1.msra.mxu0 %v165
    %379 = vmatprep.subr.mxu0 0.0
    %380 = vmatpush1.msra.mxu0 %v166
    %381 = vmatprep.subr.mxu0 0.0
    %382 = vmatpush1.msra.mxu0 %v167
    %383 = vmatprep.subr.mxu0 0.0
    %384 = vmatpush1.msra.mxu0 %v168
    %385 = vmatprep.subr.mxu0 0.0
    %386 = vmatpush1.msra.mxu0 %v169
    %387 = vmatprep.subr.mxu0 0.0
    %388 = vmatpush1.msra.mxu0 %v170
    %389 = vmatprep.subr.mxu0 0.0
    %390 = vmatpush1.msra.mxu0 %v171
    %391 = vmatprep.subr.mxu0 0.0
    %392 = vmatpush1.msra.mxu0 %v172
    %393 = vmatprep.subr.mxu0 0.0
    %394 = vmatpush1.msra.mxu0 %v173
    %395 = vmatprep.subr.mxu0 0.0
    %396 = vmatpush1.msra.mxu0 %v174
    %397 = vmatprep.subr.mxu0 0.0
    %398 = vmatpush1.msra.mxu0 %v175
    %399 = vmatprep.subr.mxu0 0.0
    %400 = vmatpush1.msra.mxu0 %v176
    %401 = vmatprep.subr.mxu0 0.0
    %402 = vmatpush1.msra.mxu0 %v177
    %403 = vmatprep.subr.mxu0 0.0
    %404 = vmatpush1.msra.mxu0 %v178
    %405 = vmatprep.subr.mxu0 0.0
    %406 = vmatpush1.msra.mxu0 %v179
    %407 = vmatprep.subr.mxu0 0.0
    %408 = vmatpush1.msra.mxu0 %v180
    %409 = vmatprep.subr.mxu0 0.0
    %410 = vmatpush1.msra.mxu0 %v181
    %411 = vmatprep.subr.mxu0 0.0
    %412 = vmatpush1.msra.mxu0 %v182
    %413 = vmatprep.subr.mxu0 0.0
    %414 = vmatpush1.msra.mxu0 %v183
    %415 = vmatprep.subr.mxu0 0.0
    %416 = vmatpush1.msra.mxu0 %v184
    %417 = vmatprep.subr.mxu0 0.0
    %418 = vmatpush1.msra.mxu0 %v185
    %419 = vmatprep.subr.mxu0 0.0
    %420 = vmatpush1.msra.mxu0 %v186
    %421 = vmatprep.subr.mxu0 0.0
    %422 = vmatpush1.msra.mxu0 %v187
    %423 = vmatprep.subr.mxu0 0.0
    %424 = vmatpush1.msra.mxu0 %v188
    %425 = vmatprep.subr.mxu0 0.0
    %426 = vmatpush1.msra.mxu0 %v189
    %427 = vmatprep.subr.mxu0 0.0
    %428 = vmatpush1.msra.mxu0 %v190
    %429 = vmatprep.subr.mxu0 0.0
    %430 = vmatpush1.msra.mxu0 %v191
    %431 = vmatprep.subr.mxu0 0.0
    %432 = vmatpush1.msra.mxu0 %v192
    %433 = vmatprep.subr.mxu0 0.0
    %434 = vmatpush1.msra.mxu0 %v193
    %435 = vmatprep.subr.mxu0 0.0
    %436 = vmatpush1.msra.mxu0 %v194
    %437 = vmatprep.subr.mxu0 0.0
    %438 = vmatpush1.msra.mxu0 %v195
    %439 = vmatprep.mubr.f32.mxu0 %v97
    %440 = vmatmul.mubr.f32.gmra.mrb[0].mxu0 %v96
    %v441 = vpop.f32.mrb[0].mxu0
    %v442 = vadd.f32 %v372, %v441
    %v443 = vpop.f32.mrb[0].mxu0
    %444 = vdwg.mxu0
    %445 = vmatprep.subr.mxu0 0.0
    %446 = vmatpush1.msra.mxu0 %v196
    %447 = vmatprep.subr.mxu0 0.0
    %448 = vmatpush1.msra.mxu0 %v197
    %449 = vmatprep.subr.mxu0 0.0
    %450 = vmatpush1.msra.mxu0 %v198
    %451 = vmatprep.subr.mxu0 0.0
    %452 = vmatpush1.msra.mxu0 %v199
    %453 = vmatprep.subr.mxu0 0.0
    %454 = vmatpush1.msra.mxu0 %v200
    %455 = vmatprep.subr.mxu0 0.0
    %456 = vmatpush1.msra.mxu0 %v201
    %457 = vmatprep.subr.mxu0 0.0
    %458 = vmatpush1.msra.mxu0 %v202
    %459 = vmatprep.subr.mxu0 0.0
    %460 = vmatpush1.msra.mxu0 %v203
    %461 = vmatprep.subr.mxu0 0.0
    %462 = vmatpush1.msra.mxu0 %v204
    %463 = vmatprep.subr.mxu0 0.0
    %464 = vmatpush1.msra.mxu0 %v205
    %465 = vmatprep.subr.mxu0 0.0
    %466 = vmatpush1.msra.mxu0 %v206
    %467 = vmatprep.subr.mxu0 0.0
    %468 = vmatpush1.msra.mxu0 %v207
    %469 = vmatprep.subr.mxu0 0.0
    %470 = vmatpush1.msra.mxu0 %v208
    %471 = vmatprep.subr.mxu0 0.0
    %472 = vmatpush1.msra.mxu0 %v209
    %473 = vmatprep.subr.mxu0 0.0
    %474 = vmatpush1.msra.mxu0 %v210
    %475 = vmatprep.subr.mxu0 0.0
    %476 = vmatpush1.msra.mxu0 %v211
    %477 = vmatprep.subr.mxu0 0.0
    %478 = vmatpush1.msra.mxu0 %v212
    %479 = vmatprep.subr.mxu0 0.0
    %480 = vmatpush1.msra.mxu0 %v213
    %481 = vmatprep.subr.mxu0 0.0
    %482 = vmatpush1.msra.mxu0 %v214
    %483 = vmatprep.subr.mxu0 0.0
    %484 = vmatpush1.msra.mxu0 %v215
    %485 = vmatprep.subr.mxu0 0.0
    %486 = vmatpush1.msra.mxu0 %v216
    %487 = vmatprep.subr.mxu0 0.0
    %488 = vmatpush1.msra.mxu0 %v217
    %489 = vmatprep.subr.mxu0 0.0
    %490 = vmatpush1.msra.mxu0 %v218
    %491 = vmatprep.subr.mxu0 0.0
    %492 = vmatpush1.msra.mxu0 %v219
    %493 = vmatprep.subr.mxu0 0.0
    %494 = vmatpush1.msra.mxu0 %v220
    %495 = vmatprep.subr.mxu0 0.0
    %496 = vmatpush1.msra.mxu0 %v221
    %497 = vmatprep.subr.mxu0 0.0
    %498 = vmatpush1.msra.mxu0 %v222
    %499 = vmatprep.subr.mxu0 0.0
    %500 = vmatpush1.msra.mxu0 %v223
    %501 = vmatprep.subr.mxu0 0.0
    %502 = vmatpush1.msra.mxu0 %v224
    %503 = vmatprep.subr.mxu0 0.0
    %504 = vmatpush1.msra.mxu0 %v225
    %505 = vmatprep.subr.mxu0 0.0
    %506 = vmatpush1.msra.mxu0 %v226
    %507 = vmatprep.subr.mxu0 0.0
    %508 = vmatpush1.msra.mxu0 %v227
    %509 = vmatprep.mubr.f32.mxu0 %v99
    %510 = vmatmul.mubr.f32.gmra.mrb[0].mxu0 %v98
    %v511 = vpop.f32.mrb[0].mxu0
    %v512 = vadd.f32 %v442, %v511
    %v513 = vpop.f32.mrb[0].mxu0
    %514 = vdwg.mxu0
    %515 = vst [vmem:[#allocation8] sm:$0xff] %v512
    // Predicated region
    $region26: #{tpu_custom_call.1} parent=1 // pred_check
      _
    $region27: #{tpu_custom_call.1} parent=1 // pred_check_branch
      %517 = sbr.rel (0) target = $region29
    $region28: #{tpu_custom_call.1} parent=1 // pred_region
      %s519 = ssub.s32 128, 128
      %520 = vsyncadd [#allocation4], %s519
      %s522 = sshll.u32 [#allocation8], 4
      %s523 = int_to_ptr.vmem [resolvable:$true] %s522
      %525 = dma.vmem_to_hbm [thread:$0]  %s523, 128, %s3, [#allocation4]
    $region29: #{tpu_custom_call.1} parent=1 // pred_fallthru
      _
    // Predicated region
    $region30: #{tpu_custom_call.1} parent=1 // pred_check
      _
    $region31: #{tpu_custom_call.1} parent=1 // pred_check_branch
      %527 = sbr.rel (0) target = $region33
    $region32: #{tpu_custom_call.1} parent=1 // pred_region
      %528 = dma.done [#allocation4], 128
    $region33: #{tpu_custom_call.1} parent=1 // pred_fallthru
      _
    %529 = vsyncpa [#allocation3], 1
    %530 = vsyncpa [#allocation6], 1
    %531 = vsyncpa [#allocation4], 1

</llo_original>
